<compile_context>
chip_gen: v6e
topology: v6e:2x2x1
jax: 0.10.0
libtpu: 0.0.40
codegen_flags: <defaults>
</compile_context>

<pallas_src>
import functools

import jax
import jax.numpy as jnp
from jax import lax
from jax.experimental import pallas as pl
from jax.experimental.pallas import tpu as pltpu

_MIB = 1024 * 1024


def _round_up(x, m):
    return (x + m - 1) // m * m


def _vmem_capacity_bytes():
    try:
        return int(pltpu.get_tpu_info().vmem_capacity_bytes)
    except Exception:
        return 64 * _MIB  # conservative: v7x per-TensorCore VMEM


# -----------------------------------------------------------------------------
# Fused-gather kernel: tables resident in VMEM, indices streamed per tile,
# row gather = one-hot MXU matmul (vectorized, exact), per-pair L2 distances
# written to a disjoint (tp, 1) output block per grid step ("parallel" axis).
# -----------------------------------------------------------------------------
def _fused_pair_l2_kernel(idx_ref, gt_tab_ref, obj_tab_ref, dist_ref, *,
                          tile_pairs, num_pairs):
    i = pl.program_id(0)
    idx = idx_ref[...]                                     # (tp, 2) int32
    gt_idx = idx[:, 0:1]                                   # (tp, 1)
    obj_idx = idx[:, 1:2]                                  # (tp, 1)
    gt_tab = gt_tab_ref[...].astype(jnp.float32)           # (N_gt, D)
    obj_tab = obj_tab_ref[...].astype(jnp.float32)         # (N_obj, D)
    n_gt = gt_tab.shape[0]
    n_obj = obj_tab.shape[0]

    one_hot_gt = (lax.broadcasted_iota(jnp.int32, (tile_pairs, n_gt), 1)
                  == gt_idx).astype(jnp.float32)
    one_hot_obj = (lax.broadcasted_iota(jnp.int32, (tile_pairs, n_obj), 1)
                   == obj_idx).astype(jnp.float32)
    # Exact row gather on the MXU (HIGHEST precision keeps f32 values intact).
    f_gt = jnp.dot(one_hot_gt, gt_tab,
                   preferred_element_type=jnp.float32,
                   precision=lax.Precision.HIGHEST)
    f_obj = jnp.dot(one_hot_obj, obj_tab,
                    preferred_element_type=jnp.float32,
                    precision=lax.Precision.HIGHEST)

    diff = f_obj - f_gt
    sq = jnp.sum(diff * diff, axis=-1, keepdims=True)      # (tp, 1)
    dist = jnp.sqrt(sq)                                    # vectorized EUP sqrt
    # Mask padded pairs (their idx is 0 and would gather real rows).
    row = i * tile_pairs + lax.broadcasted_iota(jnp.int32, (tile_pairs, 1), 0)
    dist_ref[...] = jnp.where(row < num_pairs, dist, 0.0)


# -----------------------------------------------------------------------------
# Streaming fallback kernel: pre-gathered [P, D] pair features streamed in big
# tiles; padded rows are zero so they contribute sqrt(0) = 0.
# -----------------------------------------------------------------------------
def _stream_pair_l2_kernel(gt_ref, obj_ref, dist_ref):
    x = obj_ref[...].astype(jnp.float32)
    y = gt_ref[...].astype(jnp.float32)
    diff = x - y
    dist_ref[...] = jnp.sqrt(jnp.sum(diff * diff, axis=-1, keepdims=True))


def _fused_loss_sum(features_gt, features_object, idx, p, tp_override,
                    vmem_limit):
    n_gt, d = features_gt.shape
    n_obj = features_object.shape[0]

    if tp_override is not None:
        tp = tp_override
    else:
        # Keep one-hot + gathered intermediates to a few MiB per tile.
        per_row_bytes = (n_gt + n_obj + 2 * d + 16) * 4
        budget = max(per_row_bytes, min(4 * _MIB, vmem_limit // 8))
        tp = min(budget // per_row_bytes, 1024)
    tp = _round_up(max(1, min(tp, _round_up(p, 8))), 8)
    p_pad = _round_up(p, tp)
    num_tiles = p_pad // tp

    idx_pad = jnp.pad(idx, ((0, p_pad - p), (0, 0)))  # padded rows masked in-kernel

    kernel = functools.partial(_fused_pair_l2_kernel,
                               tile_pairs=tp, num_pairs=p)
    dists = pl.pallas_call(
        kernel,
        out_shape=jax.ShapeDtypeStruct((p_pad, 1), jnp.float32),
        grid_spec=pltpu.PrefetchScalarGridSpec(
            num_scalar_prefetch=0,
            grid=(num_tiles,),
            in_specs=[
                pl.BlockSpec((tp, 2), lambda i: (i, 0)),      # pair indices
                pl.BlockSpec((n_gt, d), lambda i: (0, 0)),    # full gt table (VMEM resident)
                pl.BlockSpec((n_obj, d), lambda i: (0, 0)),   # full obj table (VMEM resident)
            ],
            out_specs=pl.BlockSpec((tp, 1), lambda i: (i, 0)),
        ),
        compiler_params=pltpu.CompilerParams(
            dimension_semantics=("parallel",),    # pair tiles are independent (megacore)
            vmem_limit_bytes=vmem_limit,
        ),
    )(idx_pad, features_gt, features_object)
    return jnp.sum(dists)


def _streaming_loss_sum(features_gt, features_object, idx, p, tp_override,
                        vmem_limit, stream_dtype):
    d = features_gt.shape[-1]
    f_obj = jnp.take(features_object, idx[:, 1], axis=0)    # [P, D]
    f_gt = jnp.take(features_gt, idx[:, 0], axis=0)         # [P, D]
    if stream_dtype is not None:
        f_obj = f_obj.astype(stream_dtype)
        f_gt = f_gt.astype(stream_dtype)
    itemsize = jnp.dtype(f_gt.dtype).itemsize

    if tp_override is not None:
        tp = tp_override
    else:
        # 2 inputs x 2 pipeline buffers x tp x D; target ~1/4 of the VMEM limit.
        per_row_bytes = 4 * d * itemsize
        budget = max(per_row_bytes, vmem_limit // 4)
        tp = min(budget // per_row_bytes, 4096)
    tp = _round_up(max(1, min(tp, _round_up(p, 8))), 8)
    p_pad = _round_up(p, tp)
    num_tiles = p_pad // tp

    if p_pad != p:
        # Zero rows contribute sqrt(0) = 0 to the distance sum.
        f_obj = jnp.pad(f_obj, ((0, p_pad - p), (0, 0)))
        f_gt = jnp.pad(f_gt, ((0, p_pad - p), (0, 0)))

    dists = pl.pallas_call(
        _stream_pair_l2_kernel,
        out_shape=jax.ShapeDtypeStruct((p_pad, 1), jnp.float32),
        grid_spec=pltpu.PrefetchScalarGridSpec(
            num_scalar_prefetch=0,
            grid=(num_tiles,),
            in_specs=[
                pl.BlockSpec((tp, d), lambda i: (i, 0)),
                pl.BlockSpec((tp, d), lambda i: (i, 0)),
            ],
            out_specs=pl.BlockSpec((tp, 1), lambda i: (i, 0)),
        ),
        compiler_params=pltpu.CompilerParams(
            dimension_semantics=("parallel",),
            vmem_limit_bytes=vmem_limit,
        ),
    )(f_gt, f_obj)
    return jnp.sum(dists)


def positive_contrastive_loss(features_gt, features_object, positive_indices,
                              *, block_pairs=None, use_fused_gather=None,
                              stream_dtype=None):
    """Mean L2 distance over the positive (gt, object) feature pairs."""
    idx = positive_indices.astype(jnp.int32)
    p = int(idx.shape[0])
    if p == 0:
        # torch .mean() of an empty tensor is NaN; match that.
        return jnp.float32(jnp.nan)

    n_gt, d = features_gt.shape
    n_obj = features_object.shape[0]

    vmem_cap = _vmem_capacity_bytes()
    vmem_limit = int(min(vmem_cap * 0.7, 100 * _MIB))   # ~45 MiB on v7x, ~90 MiB on v5e/v6e

    itemsize = jnp.dtype(features_gt.dtype).itemsize
    table_bytes = 2 * (n_gt + n_obj) * d * itemsize      # tables, double-buffered
    if use_fused_gather is None:
        use_fused_gather = (table_bytes <= min(8 * _MIB, vmem_limit // 4)
                            and (n_gt + n_obj) <= 4096)

    if use_fused_gather:
        dist_sum = _fused_loss_sum(features_gt, features_object, idx, p,
                                   block_pairs, vmem_limit)
    else:
        # TODO(synk): for tables too large for VMEM, a manual double-buffered
        # per-row DMA gather (memory_space=pl.ANY + make_async_copy) would avoid
        # this wrapper-side jnp.take HBM round trip.
        dist_sum = _streaming_loss_sum(features_gt, features_object, idx, p,
                                       block_pairs, vmem_limit, stream_dtype)
    return dist_sum / jnp.float32(p)


def _reference_loss(features_gt, features_object, positive_indices):
    f1 = features_object[positive_indices[:, 1], :]
    f2 = features_gt[positive_indices[:, 0], :]
    return jnp.sqrt(jnp.sum((f1 - f2) ** 2, axis=1)).mean()


if __name__ == "__main__":
    key = jax.random.PRNGKey(0)

    # Test 1: small shapes, auto (fused-gather) path, single tile.
    k_gt, k_obj, k_i0, k_i1, key = jax.random.split(key, 5)
    n_gt, n_obj, feat_dim, n_pairs = 16, 16, 32, 8
    features_gt = jax.random.normal(k_gt, (n_gt, feat_dim), dtype=jnp.float32)
    features_object = jax.random.normal(k_obj, (n_obj, feat_dim), dtype=jnp.float32)
    positive_indices = jnp.stack(
        [jax.random.randint(k_i0, (n_pairs,), 0, n_gt),
         jax.random.randint(k_i1, (n_pairs,), 0, n_obj)], axis=1).astype(jnp.int32)

    loss = positive_contrastive_loss(features_gt, features_object, positive_indices)
    loss = jax.block_until_ready(loss)
    ref = _reference_loss(features_gt, features_object, positive_indices)
    assert jnp.allclose(loss, ref, rtol=1e-4, atol=1e-4), ("fused small", loss, ref)

    # Larger case: P=300 (padding + masking), D=128.
    k_gt2, k_obj2, k_i02, k_i12, key = jax.random.split(key, 5)
    n_gt2, n_obj2, feat_dim2, n_pairs2 = 64, 48, 128, 300
    features_gt2 = jax.random.normal(k_gt2, (n_gt2, feat_dim2), dtype=jnp.float32)
    features_object2 = jax.random.normal(k_obj2, (n_obj2, feat_dim2), dtype=jnp.float32)
    positive_indices2 = jnp.stack(
        [jax.random.randint(k_i02, (n_pairs2,), 0, n_gt2),
         jax.random.randint(k_i12, (n_pairs2,), 0, n_obj2)], axis=1).astype(jnp.int32)
    ref2 = _reference_loss(features_gt2, features_object2, positive_indices2)

    # Test 2: fused path, forced multi-tile grid (block_pairs=128) + mask.
    loss2 = positive_contrastive_loss(
        features_gt2, features_object2, positive_indices2, block_pairs=128)
    loss2 = jax.block_until_ready(loss2)
    assert jnp.allclose(loss2, ref2, rtol=1e-4, atol=1e-4), ("fused multi", loss2, ref2)

    # Test 3: streaming fallback path (f32), multi-tile grid + zero padding.
    loss3 = positive_contrastive_loss(
        features_gt2, features_object2, positive_indices2,
        block_pairs=128, use_fused_gather=False)
    loss3 = jax.block_until_ready(loss3)
    assert jnp.allclose(loss3, ref2, rtol=1e-4, atol=1e-4), ("stream f32", loss3, ref2)

    # Test 4: streaming fallback with bf16 input streams (halved HBM traffic).
    loss4 = positive_contrastive_loss(
        features_gt2, features_object2, positive_indices2,
        use_fused_gather=False, stream_dtype=jnp.bfloat16)
    loss4 = jax.block_until_ready(loss4)
    assert jnp.allclose(loss4, ref2, rtol=5e-2, atol=5e-2), ("stream bf16", loss4, ref2)

    print("KERNEL_OK")
</pallas_src>

<mosaic_0001>
module attributes {stable_mosaic.version = 11 : i64} {
  func.func @_fused_pair_l2_kernel(%arg0: i32, %arg1: memref<8x2xi32, #tpu.memory_space<vmem>>, %arg2: memref<16x32xf32, #tpu.memory_space<vmem>>, %arg3: memref<16x32xf32, #tpu.memory_space<vmem>>, %arg4: memref<8x1xf32, #tpu.memory_space<vmem>>) attributes {dimension_semantics = [#tpu.dimension_semantics<parallel>], iteration_bounds = array<i64: 1>, scalar_prefetch = 0 : i64, scratch_operands = 0 : i64, tpu.core_type = #tpu.core_type<tc>, window_params = [{transform_indices = @transform_0, window_bounds = array<i64: 8, 2>}, {pipeline_mode = #tpu.pipeline_mode<synchronous>, transform_indices = @transform_1, window_bounds = array<i64: 16, 32>}, {pipeline_mode = #tpu.pipeline_mode<synchronous>, transform_indices = @transform_2, window_bounds = array<i64: 16, 32>}, {transform_indices = @transform_3, window_bounds = array<i64: 8, 1>}]} {
    %c0 = arith.constant 0 : index
    %c0_0 = arith.constant 0 : index
    %0 = vector.load %arg1[%c0, %c0_0] : memref<8x2xi32, #tpu.memory_space<vmem>>, vector<8x2xi32>
    %1 = vector.extract_strided_slice %0 {offsets = [0, 0], sizes = [8, 1], strides = [1, 1]} : vector<8x2xi32> to vector<8x1xi32>
    %2 = vector.extract_strided_slice %0 {offsets = [0, 1], sizes = [8, 1], strides = [1, 1]} : vector<8x2xi32> to vector<8x1xi32>
    %c0_1 = arith.constant 0 : index
    %c0_2 = arith.constant 0 : index
    %3 = vector.load %arg2[%c0_1, %c0_2] : memref<16x32xf32, #tpu.memory_space<vmem>>, vector<16x32xf32>
    %c0_3 = arith.constant 0 : index
    %c0_4 = arith.constant 0 : index
    %4 = vector.load %arg3[%c0_3, %c0_4] : memref<16x32xf32, #tpu.memory_space<vmem>>, vector<16x32xf32>
    %5 = tpu.iota {dimensions = array<i32: 1>} : vector<8x16xi32>
    %6 = vector.broadcast %1 : vector<8x1xi32> to vector<8x16xi32>
    %7 = arith.cmpi eq, %5, %6 : vector<8x16xi32>
    %8 = arith.extui %7 : vector<8x16xi1> to vector<8x16xi32>
    %9 = arith.sitofp %8 : vector<8x16xi32> to vector<8x16xf32>
    %10 = tpu.iota {dimensions = array<i32: 1>} : vector<8x16xi32>
    %11 = vector.broadcast %2 : vector<8x1xi32> to vector<8x16xi32>
    %12 = arith.cmpi eq, %10, %11 : vector<8x16xi32>
    %13 = arith.extui %12 : vector<8x16xi1> to vector<8x16xi32>
    %14 = arith.sitofp %13 : vector<8x16xi32> to vector<8x16xf32>
    %cst = arith.constant dense<0.000000e+00> : vector<8x32xf32>
    %15 = tpu.matmul %9, %3, %cst {dimension_numbers = #tpu.dot_dimension_numbers<[1], [0], [0], [1], [0, 0, 1, 1], [], []>, precision = #tpu.contract_precision<fp32>} : vector<8x16xf32>, vector<16x32xf32>, vector<8x32xf32> -> vector<8x32xf32>
    %cst_5 = arith.constant dense<0.000000e+00> : vector<8x32xf32>
    %16 = tpu.matmul %14, %4, %cst_5 {dimension_numbers = #tpu.dot_dimension_numbers<[1], [0], [0], [1], [0, 0, 1, 1], [], []>, precision = #tpu.contract_precision<fp32>} : vector<8x16xf32>, vector<16x32xf32>, vector<8x32xf32> -> vector<8x32xf32>
    %17 = arith.subf %16, %15 : vector<8x32xf32>
    %18 = arith.mulf %17, %17 : vector<8x32xf32>
    %cst_6 = arith.constant dense<0.000000e+00> : vector<8xf32>
    %19 = vector.multi_reduction <add>, %18, %cst_6 [1] : vector<8x32xf32> to vector<8xf32>
    %20 = vector.shape_cast %19 : vector<8xf32> to vector<8x1xf32>
    %21 = math.sqrt %20 : vector<8x1xf32>
    %c8_i32 = arith.constant 8 : i32
    %22 = arith.muli %arg0, %c8_i32 : i32
    %23 = tpu.iota {dimensions = array<i32: 0>} : vector<8x1xi32>
    %24 = vector.broadcast %22 : i32 to vector<8x1xi32>
    %25 = arith.addi %24, %23 : vector<8x1xi32>
    %c8_i32_7 = arith.constant 8 : i32
    %26 = vector.broadcast %c8_i32_7 : i32 to vector<8x1xi32>
    %27 = arith.cmpi slt, %25, %26 : vector<8x1xi32>
    %cst_8 = arith.constant 0.000000e+00 : f32
    %28 = vector.broadcast %cst_8 : f32 to vector<8x1xf32>
    %29 = arith.select %27, %21, %28 : vector<8x1xi1>, vector<8x1xf32>
    %c0_9 = arith.constant 0 : index
    %c0_10 = arith.constant 0 : index
    %30 = vector.load %arg4[%c0_9, %c0_10] : memref<8x1xf32, #tpu.memory_space<vmem>>, vector<8x1xf32>
    tpu.vector_store %arg4[%c0_9, %c0_10], %29 {strides = array<i32>} : memref<8x1xf32, #tpu.memory_space<vmem>>, vector<8x1xf32>,
    return
  }
  func.func @transform_0(%arg0: i32) -> (i32, i32) {
    %c0_i32 = arith.constant 0 : i32
    %c0_i32_0 = arith.constant 0 : i32
    return %arg0, %c0_i32 : i32, i32
  }
  func.func @transform_1(%arg0: i32) -> (i32, i32) {
    %c0_i32 = arith.constant 0 : i32
    %c0_i32_0 = arith.constant 0 : i32
    %c0_i32_1 = arith.constant 0 : i32
    return %c0_i32, %c0_i32_0 : i32, i32
  }
  func.func @transform_2(%arg0: i32) -> (i32, i32) {
    %c0_i32 = arith.constant 0 : i32
    %c0_i32_0 = arith.constant 0 : i32
    %c0_i32_1 = arith.constant 0 : i32
    return %c0_i32, %c0_i32_0 : i32, i32
  }
  func.func @transform_3(%arg0: i32) -> (i32, i32) {
    %c0_i32 = arith.constant 0 : i32
    %c0_i32_0 = arith.constant 0 : i32
    return %arg0, %c0_i32 : i32, i32
  }
}

</mosaic_0001>

<llo_original>
// kernel: tpu_custom_call.1
$region0: #{tpu_custom_call.1}
  #allocation0 [shape = 'u32[]', space=smem, size = 0x4, offset = 0x4, fixed_abs, tag = 'smem constant byte address 0x4 - core index']
  #allocation1 [shape = 'u32[144,128]{1,0:T(1,128)}', space=vmem, size = 0x12000, scoped, tag = 'internal scratch']
  %s0 = inlined_call_operand.vmem [shape: s32[8,2], index: 0, kind: input, shape index: {}]
  %s1 = inlined_call_operand.hbm [shape: f32[16,32], index: 1, kind: input, shape index: {}]
  %s2 = inlined_call_operand.hbm [shape: f32[16,32], index: 2, kind: input, shape index: {}]
  %s3 = inlined_call_operand.vmem [shape: f32[8,1], index: 3, kind: output, shape index: {}]
  %s4 = sld [smem:[#allocation0]]
  $region30: #{tpu_custom_call.1} parent=0
    _
  %s6 = ssub.s32 1, %s4
  %s7 = scalar_select 0, %s6, %s4
  $region1: #{tpu_custom_call.1} parent=0
    #allocation2 [shape = 'u8[8192]{0}', space=vmem, size = 0x2000, scoped, tag = 'input window, operand 1, single buffered']
    #allocation3 [shape = 's32[1]{0}', space=sflag, size = 0x4, scoped, tag = 'scoped memory for tpu_custom_call.1']
    #allocation4 [shape = 'u8[8192]{0}', space=vmem, size = 0x2000, scoped, tag = 'input window, operand 2, single buffered']
    #allocation5 [shape = 's32[1]{0}', space=sflag, size = 0x4, scoped, tag = 'scoped memory for tpu_custom_call.1']
    %8 = vsyncpa [#allocation3], 0
    %9 = vsyncpa [#allocation5], 0
    // Predicated region
    $region2: #{tpu_custom_call.1} parent=1 // pred_check
      _
    $region3: #{tpu_custom_call.1} parent=1 // pred_check_branch
      %11 = sbr.rel (0) target = $region5
    $region4: #{tpu_custom_call.1} parent=1 // pred_region
      _
    $region5: #{tpu_custom_call.1} parent=1 // pred_fallthru
      _
    // Predicated region
    $region6: #{tpu_custom_call.1} parent=1 // pred_check
      _
    $region7: #{tpu_custom_call.1} parent=1 // pred_check_branch
      %13 = sbr.rel (0) target = $region9
    $region8: #{tpu_custom_call.1} parent=1 // pred_region
      %s15 = ssub.s32 256, 256
      %16 = vsyncadd [#allocation3], %s15
      %s17 = sshll.u32 [#allocation2], 4
      %s18 = int_to_ptr.vmem [resolvable:$true] %s17
      %23 = dma.hbm_to_vmem [thread:$0]  %s1, 256, %s18, [#allocation3], 128, 128, 8
    $region9: #{tpu_custom_call.1} parent=1 // pred_fallthru
      _
    // Predicated region
    $region10: #{tpu_custom_call.1} parent=1 // pred_check
      _
    $region11: #{tpu_custom_call.1} parent=1 // pred_check_branch
      %25 = sbr.rel (0) target = $region13
    $region12: #{tpu_custom_call.1} parent=1 // pred_region
      %s27 = ssub.s32 256, 256
      %28 = vsyncadd [#allocation5], %s27
      %s29 = sshll.u32 [#allocation4], 4
      %s30 = int_to_ptr.vmem [resolvable:$true] %s29
      %35 = dma.hbm_to_vmem [thread:$0]  %s2, 256, %s30, [#allocation5], 128, 128, 8
    $region13: #{tpu_custom_call.1} parent=1 // pred_fallthru
      _
    // Predicated region
    $region14: #{tpu_custom_call.1} parent=1 // pred_check
      _
    $region15: #{tpu_custom_call.1} parent=1 // pred_check_branch
      %37 = sbr.rel (0) target = $region17
    $region16: #{tpu_custom_call.1} parent=1 // pred_region
      %38 = dma.done [#allocation3], 256
    $region17: #{tpu_custom_call.1} parent=1 // pred_fallthru
      _
    // Predicated region
    $region18: #{tpu_custom_call.1} parent=1 // pred_check
      _
    $region19: #{tpu_custom_call.1} parent=1 // pred_check_branch
      %40 = sbr.rel (0) target = $region21
    $region20: #{tpu_custom_call.1} parent=1 // pred_region
      %41 = dma.done [#allocation5], 256
    $region21: #{tpu_custom_call.1} parent=1 // pred_fallthru
      _
    %v42 = vld [vmem:[%s0] sm:$0xff]
    %v43 = vld [vmem:[#allocation2] sm:$0xff]
    %v44 = vld [vmem:[#allocation2 + $0x8] sm:$0xff]
    %v45 = vld [vmem:[#allocation4] sm:$0xff]
    %v46 = vld [vmem:[#allocation4 + $0x8] sm:$0xff]
    %v47 = vlaneseq
    %v48 = vand.u32 %v47, 127
    %49 = vset.pattern.permute.xlu0 0
    %50 = vperm.xlu0 %49, %v42
    %v51 = vpop.permute.xlu0 %50
    %vm52 = vcmp.eq.s32.totalorder %v48, %v51
    %v53 = vsel %vm52, 1, 0
    %v54 = vcvt.s32.f32 %v53
    %55 = vset.pattern.permute.xlu0 1
    %56 = vperm.xlu0 %55, %v42
    %v57 = vpop.permute.xlu0 %56
    %vm58 = vcmp.eq.s32.totalorder %v48, %v57
    %v59 = vsel %vm58, 1, 0
    %v60 = vcvt.s32.f32 %v59
    %vm61 = vcmask 130048
    %v63 = vsel %vm61, %v54, 0
    %65 = vmatprep.subr.mxu0 0.0
    %66 = vmatpush1.msra.mxu0 0.0
    %67 = vmatprep.subr.mxu0 0.0
    %68 = vmatpush1.msra.mxu0 0.0
    %69 = vmatprep.subr.mxu0 0.0
    %70 = vmatpush1.msra.mxu0 0.0
    %71 = vmatprep.subr.mxu0 0.0
    %72 = vmatpush1.msra.mxu0 0.0
    %73 = vmatprep.subr.mxu0 0.0
    %74 = vmatpush1.msra.mxu0 0.0
    %75 = vmatprep.subr.mxu0 0.0
    %76 = vmatpush1.msra.mxu0 0.0
    %77 = vmatprep.subr.mxu0 0.0
    %78 = vmatpush1.msra.mxu0 0.0
    %79 = vmatprep.subr.mxu0 0.0
    %80 = vmatpush1.msra.mxu0 0.0
    %81 = vmatprep.subr.mxu0 0.0
    %82 = vmatpush1.msra.mxu0 0.0
    %83 = vmatprep.subr.mxu0 0.0
    %84 = vmatpush1.msra.mxu0 0.0
    %85 = vmatprep.subr.mxu0 0.0
    %86 = vmatpush1.msra.mxu0 0.0
    %87 = vmatprep.subr.mxu0 0.0
    %88 = vmatpush1.msra.mxu0 0.0
    %89 = vmatprep.subr.mxu0 0.0
    %90 = vmatpush1.msra.mxu0 0.0
    %91 = vmatprep.subr.mxu0 0.0
    %92 = vmatpush1.msra.mxu0 0.0
    %93 = vmatprep.subr.mxu0 0.0
    %v94 = vand.u32 %v44, 4294901760
    %95 = vmatpush1.msra.mxu0 %v94
    %96 = vmatprep.subr.mxu0 0.0
    %v97 = vand.u32 %v43, 4294901760
    %98 = vmatpush1.msra.mxu0 %v97
    %99 = vmatprep.subr.mxu0 0.0
    %100 = vmatpush2.msra.mxu0 0.0
    %101 = vmatprep.subr.mxu0 0.0
    %102 = vmatpush2.msra.mxu0 0.0
    %103 = vmatprep.subr.mxu0 0.0
    %104 = vmatpush2.msra.mxu0 0.0
    %105 = vmatprep.subr.mxu0 0.0
    %106 = vmatpush2.msra.mxu0 0.0
    %107 = vmatprep.subr.mxu0 0.0
    %108 = vmatpush2.msra.mxu0 0.0
    %109 = vmatprep.subr.mxu0 0.0
    %110 = vmatpush2.msra.mxu0 0.0
    %111 = vmatprep.subr.mxu0 0.0
    %112 = vmatpush2.msra.mxu0 0.0
    %113 = vmatprep.subr.mxu0 0.0
    %114 = vmatpush2.msra.mxu0 0.0
    %115 = vmatprep.subr.mxu0 0.0
    %116 = vmatpush2.msra.mxu0 0.0
    %117 = vmatprep.subr.mxu0 0.0
    %118 = vmatpush2.msra.mxu0 0.0
    %119 = vmatprep.subr.mxu0 0.0
    %120 = vmatpush2.msra.mxu0 0.0
    %121 = vmatprep.subr.mxu0 0.0
    %122 = vmatpush2.msra.mxu0 0.0
    %123 = vmatprep.subr.mxu0 0.0
    %124 = vmatpush2.msra.mxu0 0.0
    %125 = vmatprep.subr.mxu0 0.0
    %126 = vmatpush2.msra.mxu0 0.0
    %127 = vmatprep.subr.mxu0 0.0
    %128 = vmatpush2.msra.mxu0 0.0
    %129 = vmatprep.subr.mxu0 0.0
    %130 = vmatpush2.msra.mxu0 0.0
    %131 = vmatprep.mubr.f32.mxu0 0.0
    %v132 = vand.u32 %v63, 4294901760
    %v133 = vsub.f32 %v63, %v132
    %v134 = vand.u32 %v133, 4294901760
    %v135 = vsub.f32 %v133, %v134
    %v136 = vand.u32 %v135, 4294901760
    %137 = vmatmul.mubr.f32.gmra.mxu0 %v136
    %v138 = vpop.f32.mrf.mxu0
    %v139 = vadd.f32 0.0, %v138
    %v140 = vpop.f32.mrf.mxu0
    %141 = vdwg.mxu0
    %142 = vmatprep.subr.mxu0 0.0
    %143 = vmatpush1.msra.mxu0 0.0
    %144 = vmatprep.subr.mxu0 0.0
    %145 = vmatpush1.msra.mxu0 0.0
    %146 = vmatprep.subr.mxu0 0.0
    %147 = vmatpush1.msra.mxu0 0.0
    %148 = vmatprep.subr.mxu0 0.0
    %149 = vmatpush1.msra.mxu0 0.0
    %150 = vmatprep.subr.mxu0 0.0
    %151 = vmatpush1.msra.mxu0 0.0
    %152 = vmatprep.subr.mxu0 0.0
    %153 = vmatpush1.msra.mxu0 0.0
    %154 = vmatprep.subr.mxu0 0.0
    %155 = vmatpush1.msra.mxu0 0.0
    %156 = vmatprep.subr.mxu0 0.0
    %157 = vmatpush1.msra.mxu0 0.0
    %158 = vmatprep.subr.mxu0 0.0
    %159 = vmatpush1.msra.mxu0 0.0
    %160 = vmatprep.subr.mxu0 0.0
    %161 = vmatpush1.msra.mxu0 0.0
    %162 = vmatprep.subr.mxu0 0.0
    %163 = vmatpush1.msra.mxu0 0.0
    %164 = vmatprep.subr.mxu0 0.0
    %165 = vmatpush1.msra.mxu0 0.0
    %166 = vmatprep.subr.mxu0 0.0
    %167 = vmatpush1.msra.mxu0 0.0
    %168 = vmatprep.subr.mxu0 0.0
    %169 = vmatpush1.msra.mxu0 0.0
    %170 = vmatprep.subr.mxu0 0.0
    %v171 = vand.u32 %v44, 4294901760
    %v172 = vsub.f32 %v44, %v171
    %v173 = vand.u32 %v172, 4294901760
    %v174 = vsub.f32 %v172, %v173
    %v175 = vand.u32 %v174, 4294901760
    %176 = vmatpush1.msra.mxu0 %v175
    %177 = vmatprep.subr.mxu0 0.0
    %v178 = vand.u32 %v43, 4294901760
    %v179 = vsub.f32 %v43, %v178
    %v180 = vand.u32 %v179, 4294901760
    %v181 = vsub.f32 %v179, %v180
    %v182 = vand.u32 %v181, 4294901760
    %183 = vmatpush1.msra.mxu0 %v182
    %184 = vmatprep.subr.mxu0 0.0
    %185 = vmatpush2.msra.mxu0 0.0
    %186 = vmatprep.subr.mxu0 0.0
    %187 = vmatpush2.msra.mxu0 0.0
    %188 = vmatprep.subr.mxu0 0.0
    %189 = vmatpush2.msra.mxu0 0.0
    %190 = vmatprep.subr.mxu0 0.0
    %191 = vmatpush2.msra.mxu0 0.0
    %192 = vmatprep.subr.mxu0 0.0
    %193 = vmatpush2.msra.mxu0 0.0
    %194 = vmatprep.subr.mxu0 0.0
    %195 = vmatpush2.msra.mxu0 0.0
    %196 = vmatprep.subr.mxu0 0.0
    %197 = vmatpush2.msra.mxu0 0.0
    %198 = vmatprep.subr.mxu0 0.0
    %199 = vmatpush2.msra.mxu0 0.0
    %200 = vmatprep.subr.mxu0 0.0
    %201 = vmatpush2.msra.mxu0 0.0
    %202 = vmatprep.subr.mxu0 0.0
    %203 = vmatpush2.msra.mxu0 0.0
    %204 = vmatprep.subr.mxu0 0.0
    %205 = vmatpush2.msra.mxu0 0.0
    %206 = vmatprep.subr.mxu0 0.0
    %207 = vmatpush2.msra.mxu0 0.0
    %208 = vmatprep.subr.mxu0 0.0
    %209 = vmatpush2.msra.mxu0 0.0
    %210 = vmatprep.subr.mxu0 0.0
    %211 = vmatpush2.msra.mxu0 0.0
    %212 = vmatprep.subr.mxu0 0.0
    %213 = vmatpush2.msra.mxu0 0.0
    %214 = vmatprep.subr.mxu0 0.0
    %215 = vmatpush2.msra.mxu0 0.0
    %216 = vmatprep.mubr.f32.mxu0 0.0
    %v217 = vand.u32 %v63, 4294901760
    %218 = vmatmul.mubr.f32.gmra.mxu0 %v217
    %v219 = vpop.f32.mrf.mxu0
    %v220 = vadd.f32 %v139, %v219
    %v221 = vpop.f32.mrf.mxu0
    %222 = vdwg.mxu0
    %223 = vmatprep.subr.mxu0 0.0
    %224 = vmatpush1.msra.mxu0 0.0
    %225 = vmatprep.subr.mxu0 0.0
    %226 = vmatpush1.msra.mxu0 0.0
    %227 = vmatprep.subr.mxu0 0.0
    %228 = vmatpush1.msra.mxu0 0.0
    %229 = vmatprep.subr.mxu0 0.0
    %230 = vmatpush1.msra.mxu0 0.0
    %231 = vmatprep.subr.mxu0 0.0
    %232 = vmatpush1.msra.mxu0 0.0
    %233 = vmatprep.subr.mxu0 0.0
    %234 = vmatpush1.msra.mxu0 0.0
    %235 = vmatprep.subr.mxu0 0.0
    %236 = vmatpush1.msra.mxu0 0.0
    %237 = vmatprep.subr.mxu0 0.0
    %238 = vmatpush1.msra.mxu0 0.0
    %239 = vmatprep.subr.mxu0 0.0
    %240 = vmatpush1.msra.mxu0 0.0
    %241 = vmatprep.subr.mxu0 0.0
    %242 = vmatpush1.msra.mxu0 0.0
    %243 = vmatprep.subr.mxu0 0.0
    %244 = vmatpush1.msra.mxu0 0.0
    %245 = vmatprep.subr.mxu0 0.0
    %246 = vmatpush1.msra.mxu0 0.0
    %247 = vmatprep.subr.mxu0 0.0
    %248 = vmatpush1.msra.mxu0 0.0
    %249 = vmatprep.subr.mxu0 0.0
    %250 = vmatpush1.msra.mxu0 0.0
    %251 = vmatprep.subr.mxu0 0.0
    %v252 = vand.u32 %v44, 4294901760
    %v253 = vsub.f32 %v44, %v252
    %254 = vmatpush1.msra.mxu0 %v253
    %255 = vmatprep.subr.mxu0 0.0
    %v256 = vand.u32 %v43, 4294901760
    %v257 = vsub.f32 %v43, %v256
    %258 = vmatpush1.msra.mxu0 %v257
    %259 = vmatprep.subr.mxu0 0.0
    %260 = vmatpush2.msra.mxu0 0.0
    %261 = vmatprep.subr.mxu0 0.0
    %262 = vmatpush2.msra.mxu0 0.0
    %263 = vmatprep.subr.mxu0 0.0
    %264 = vmatpush2.msra.mxu0 0.0
    %265 = vmatprep.subr.mxu0 0.0
    %266 = vmatpush2.msra.mxu0 0.0
    %267 = vmatprep.subr.mxu0 0.0
    %268 = vmatpush2.msra.mxu0 0.0
    %269 = vmatprep.subr.mxu0 0.0
    %270 = vmatpush2.msra.mxu0 0.0
    %271 = vmatprep.subr.mxu0 0.0
    %272 = vmatpush2.msra.mxu0 0.0
    %273 = vmatprep.subr.mxu0 0.0
    %274 = vmatpush2.msra.mxu0 0.0
    %275 = vmatprep.subr.mxu0 0.0
    %276 = vmatpush2.msra.mxu0 0.0
    %277 = vmatprep.subr.mxu0 0.0
    %278 = vmatpush2.msra.mxu0 0.0
    %279 = vmatprep.subr.mxu0 0.0
    %280 = vmatpush2.msra.mxu0 0.0
    %281 = vmatprep.subr.mxu0 0.0
    %282 = vmatpush2.msra.mxu0 0.0
    %283 = vmatprep.subr.mxu0 0.0
    %284 = vmatpush2.msra.mxu0 0.0
    %285 = vmatprep.subr.mxu0 0.0
    %286 = vmatpush2.msra.mxu0 0.0
    %287 = vmatprep.subr.mxu0 0.0
    %288 = vmatpush2.msra.mxu0 0.0
    %289 = vmatprep.subr.mxu0 0.0
    %290 = vmatpush2.msra.mxu0 0.0
    %291 = vmatprep.mubr.f32.mxu0 0.0
    %v292 = vand.u32 %v63, 4294901760
    %v293 = vsub.f32 %v63, %v292
    %294 = vmatmul.mubr.f32.gmra.mxu0 %v293
    %v295 = vpop.f32.mrf.mxu0
    %v296 = vadd.f32 %v220, %v295
    %v297 = vpop.f32.mrf.mxu0
    %298 = vdwg.mxu0
    %299 = vmatprep.subr.mxu0 0.0
    %300 = vmatpush1.msra.mxu0 0.0
    %301 = vmatprep.subr.mxu0 0.0
    %302 = vmatpush1.msra.mxu0 0.0
    %303 = vmatprep.subr.mxu0 0.0
    %304 = vmatpush1.msra.mxu0 0.0
    %305 = vmatprep.subr.mxu0 0.0
    %306 = vmatpush1.msra.mxu0 0.0
    %307 = vmatprep.subr.mxu0 0.0
    %308 = vmatpush1.msra.mxu0 0.0
    %309 = vmatprep.subr.mxu0 0.0
    %310 = vmatpush1.msra.mxu0 0.0
    %311 = vmatprep.subr.mxu0 0.0
    %312 = vmatpush1.msra.mxu0 0.0
    %313 = vmatprep.subr.mxu0 0.0
    %314 = vmatpush1.msra.mxu0 0.0
    %315 = vmatprep.subr.mxu0 0.0
    %316 = vmatpush1.msra.mxu0 0.0
    %317 = vmatprep.subr.mxu0 0.0
    %318 = vmatpush1.msra.mxu0 0.0
    %319 = vmatprep.subr.mxu0 0.0
    %320 = vmatpush1.msra.mxu0 0.0
    %321 = vmatprep.subr.mxu0 0.0
    %322 = vmatpush1.msra.mxu0 0.0
    %323 = vmatprep.subr.mxu0 0.0
    %324 = vmatpush1.msra.mxu0 0.0
    %325 = vmatprep.subr.mxu0 0.0
    %326 = vmatpush1.msra.mxu0 0.0
    %327 = vmatprep.subr.mxu0 0.0
    %v328 = vand.u32 %v44, 4294901760
    %329 = vmatpush1.msra.mxu0 %v328
    %330 = vmatprep.subr.mxu0 0.0
    %v331 = vand.u32 %v43, 4294901760
    %332 = vmatpush1.msra.mxu0 %v331
    %333 = vmatprep.subr.mxu0 0.0
    %334 = vmatpush2.msra.mxu0 0.0
    %335 = vmatprep.subr.mxu0 0.0
    %336 = vmatpush2.msra.mxu0 0.0
    %337 = vmatprep.subr.mxu0 0.0
    %338 = vmatpush2.msra.mxu0 0.0
    %339 = vmatprep.subr.mxu0 0.0
    %340 = vmatpush2.msra.mxu0 0.0
    %341 = vmatprep.subr.mxu0 0.0
    %342 = vmatpush2.msra.mxu0 0.0
    %343 = vmatprep.subr.mxu0 0.0
    %344 = vmatpush2.msra.mxu0 0.0
    %345 = vmatprep.subr.mxu0 0.0
    %346 = vmatpush2.msra.mxu0 0.0
    %347 = vmatprep.subr.mxu0 0.0
    %348 = vmatpush2.msra.mxu0 0.0
    %349 = vmatprep.subr.mxu0 0.0
    %350 = vmatpush2.msra.mxu0 0.0
    %351 = vmatprep.subr.mxu0 0.0
    %352 = vmatpush2.msra.mxu0 0.0
    %353 = vmatprep.subr.mxu0 0.0
    %354 = vmatpush2.msra.mxu0 0.0
    %355 = vmatprep.subr.mxu0 0.0
    %356 = vmatpush2.msra.mxu0 0.0
    %357 = vmatprep.subr.mxu0 0.0
    %358 = vmatpush2.msra.mxu0 0.0
    %359 = vmatprep.subr.mxu0 0.0
    %360 = vmatpush2.msra.mxu0 0.0
    %361 = vmatprep.subr.mxu0 0.0
    %362 = vmatpush2.msra.mxu0 0.0
    %363 = vmatprep.subr.mxu0 0.0
    %364 = vmatpush2.msra.mxu0 0.0
    %365 = vmatprep.mubr.f32.mxu0 0.0
    %v366 = vand.u32 %v63, 4294901760
    %v367 = vsub.f32 %v63, %v366
    %v368 = vand.u32 %v367, 4294901760
    %369 = vmatmul.mubr.f32.gmra.mxu0 %v368
    %v370 = vpop.f32.mrf.mxu0
    %v371 = vadd.f32 %v296, %v370
    %v372 = vpop.f32.mrf.mxu0
    %373 = vdwg.mxu0
    %374 = vmatprep.subr.mxu0 0.0
    %375 = vmatpush1.msra.mxu0 0.0
    %376 = vmatprep.subr.mxu0 0.0
    %377 = vmatpush1.msra.mxu0 0.0
    %378 = vmatprep.subr.mxu0 0.0
    %379 = vmatpush1.msra.mxu0 0.0
    %380 = vmatprep.subr.mxu0 0.0
    %381 = vmatpush1.msra.mxu0 0.0
    %382 = vmatprep.subr.mxu0 0.0
    %383 = vmatpush1.msra.mxu0 0.0
    %384 = vmatprep.subr.mxu0 0.0
    %385 = vmatpush1.msra.mxu0 0.0
    %386 = vmatprep.subr.mxu0 0.0
    %387 = vmatpush1.msra.mxu0 0.0
    %388 = vmatprep.subr.mxu0 0.0
    %389 = vmatpush1.msra.mxu0 0.0
    %390 = vmatprep.subr.mxu0 0.0
    %391 = vmatpush1.msra.mxu0 0.0
    %392 = vmatprep.subr.mxu0 0.0
    %393 = vmatpush1.msra.mxu0 0.0
    %394 = vmatprep.subr.mxu0 0.0
    %395 = vmatpush1.msra.mxu0 0.0
    %396 = vmatprep.subr.mxu0 0.0
    %397 = vmatpush1.msra.mxu0 0.0
    %398 = vmatprep.subr.mxu0 0.0
    %399 = vmatpush1.msra.mxu0 0.0
    %400 = vmatprep.subr.mxu0 0.0
    %401 = vmatpush1.msra.mxu0 0.0
    %402 = vmatprep.subr.mxu0 0.0
    %v403 = vand.u32 %v44, 4294901760
    %v404 = vsub.f32 %v44, %v403
    %v405 = vand.u32 %v404, 4294901760
    %406 = vmatpush1.msra.mxu0 %v405
    %407 = vmatprep.subr.mxu0 0.0
    %v408 = vand.u32 %v43, 4294901760
    %v409 = vsub.f32 %v43, %v408
    %v410 = vand.u32 %v409, 4294901760
    %411 = vmatpush1.msra.mxu0 %v410
    %412 = vmatprep.subr.mxu0 0.0
    %413 = vmatpush2.msra.mxu0 0.0
    %414 = vmatprep.subr.mxu0 0.0
    %415 = vmatpush2.msra.mxu0 0.0
    %416 = vmatprep.subr.mxu0 0.0
    %417 = vmatpush2.msra.mxu0 0.0
    %418 = vmatprep.subr.mxu0 0.0
    %419 = vmatpush2.msra.mxu0 0.0
    %420 = vmatprep.subr.mxu0 0.0
    %421 = vmatpush2.msra.mxu0 0.0
    %422 = vmatprep.subr.mxu0 0.0
    %423 = vmatpush2.msra.mxu0 0.0
    %424 = vmatprep.subr.mxu0 0.0
    %425 = vmatpush2.msra.mxu0 0.0
    %426 = vmatprep.subr.mxu0 0.0
    %427 = vmatpush2.msra.mxu0 0.0
    %428 = vmatprep.subr.mxu0 0.0
    %429 = vmatpush2.msra.mxu0 0.0
    %430 = vmatprep.subr.mxu0 0.0
    %431 = vmatpush2.msra.mxu0 0.0
    %432 = vmatprep.subr.mxu0 0.0
    %433 = vmatpush2.msra.mxu0 0.0
    %434 = vmatprep.subr.mxu0 0.0
    %435 = vmatpush2.msra.mxu0 0.0
    %436 = vmatprep.subr.mxu0 0.0
    %437 = vmatpush2.msra.mxu0 0.0
    %438 = vmatprep.subr.mxu0 0.0
    %439 = vmatpush2.msra.mxu0 0.0
    %440 = vmatprep.subr.mxu0 0.0
    %441 = vmatpush2.msra.mxu0 0.0
    %442 = vmatprep.subr.mxu0 0.0
    %443 = vmatpush2.msra.mxu0 0.0
    %444 = vmatprep.mubr.f32.mxu0 0.0
    %v445 = vand.u32 %v63, 4294901760
    %446 = vmatmul.mubr.f32.gmra.mxu0 %v445
    %v447 = vpop.f32.mrf.mxu0
    %v448 = vadd.f32 %v371, %v447
    %v449 = vpop.f32.mrf.mxu0
    %450 = vdwg.mxu0
    %451 = vmatprep.subr.mxu0 0.0
    %452 = vmatpush1.msra.mxu0 0.0
    %453 = vmatprep.subr.mxu0 0.0
    %454 = vmatpush1.msra.mxu0 0.0
    %455 = vmatprep.subr.mxu0 0.0
    %456 = vmatpush1.msra.mxu0 0.0
    %457 = vmatprep.subr.mxu0 0.0
    %458 = vmatpush1.msra.mxu0 0.0
    %459 = vmatprep.subr.mxu0 0.0
    %460 = vmatpush1.msra.mxu0 0.0
    %461 = vmatprep.subr.mxu0 0.0
    %462 = vmatpush1.msra.mxu0 0.0
    %463 = vmatprep.subr.mxu0 0.0
    %464 = vmatpush1.msra.mxu0 0.0
    %465 = vmatprep.subr.mxu0 0.0
    %466 = vmatpush1.msra.mxu0 0.0
    %467 = vmatprep.subr.mxu0 0.0
    %468 = vmatpush1.msra.mxu0 0.0
    %469 = vmatprep.subr.mxu0 0.0
    %470 = vmatpush1.msra.mxu0 0.0
    %471 = vmatprep.subr.mxu0 0.0
    %472 = vmatpush1.msra.mxu0 0.0
    %473 = vmatprep.subr.mxu0 0.0
    %474 = vmatpush1.msra.mxu0 0.0
    %475 = vmatprep.subr.mxu0 0.0
    %476 = vmatpush1.msra.mxu0 0.0
    %477 = vmatprep.subr.mxu0 0.0
    %478 = vmatpush1.msra.mxu0 0.0
    %479 = vmatprep.subr.mxu0 0.0
    %v480 = vand.u32 %v44, 4294901760
    %481 = vmatpush1.msra.mxu0 %v480
    %482 = vmatprep.subr.mxu0 0.0
    %v483 = vand.u32 %v43, 4294901760
    %484 = vmatpush1.msra.mxu0 %v483
    %485 = vmatprep.subr.mxu0 0.0
    %486 = vmatpush2.msra.mxu0 0.0
    %487 = vmatprep.subr.mxu0 0.0
    %488 = vmatpush2.msra.mxu0 0.0
    %489 = vmatprep.subr.mxu0 0.0
    %490 = vmatpush2.msra.mxu0 0.0
    %491 = vmatprep.subr.mxu0 0.0
    %492 = vmatpush2.msra.mxu0 0.0
    %493 = vmatprep.subr.mxu0 0.0
    %494 = vmatpush2.msra.mxu0 0.0
    %495 = vmatprep.subr.mxu0 0.0
    %496 = vmatpush2.msra.mxu0 0.0
    %497 = vmatprep.subr.mxu0 0.0
    %498 = vmatpush2.msra.mxu0 0.0
    %499 = vmatprep.subr.mxu0 0.0
    %500 = vmatpush2.msra.mxu0 0.0
    %501 = vmatprep.subr.mxu0 0.0
    %502 = vmatpush2.msra.mxu0 0.0
    %503 = vmatprep.subr.mxu0 0.0
    %504 = vmatpush2.msra.mxu0 0.0
    %505 = vmatprep.subr.mxu0 0.0
    %506 = vmatpush2.msra.mxu0 0.0
    %507 = vmatprep.subr.mxu0 0.0
    %508 = vmatpush2.msra.mxu0 0.0
    %509 = vmatprep.subr.mxu0 0.0
    %510 = vmatpush2.msra.mxu0 0.0
    %511 = vmatprep.subr.mxu0 0.0
    %512 = vmatpush2.msra.mxu0 0.0
    %513 = vmatprep.subr.mxu0 0.0
    %514 = vmatpush2.msra.mxu0 0.0
    %515 = vmatprep.subr.mxu0 0.0
    %516 = vmatpush2.msra.mxu0 0.0
    %517 = vmatprep.mubr.f32.mxu0 0.0
    %v518 = vand.u32 %v63, 4294901760
    %519 = vmatmul.mubr.f32.gmra.mxu0 %v518
    %v520 = vpop.f32.mrf.mxu0
    %v521 = vadd.f32 %v448, %v520
    %v522 = vpop.f32.mrf.mxu0
    %523 = vdwg.mxu0
    %v525 = vsel %vm61, %v60, 0
    %527 = vmatprep.subr.mxu0 0.0
    %528 = vmatpush1.msra.mxu0 0.0
    %529 = vmatprep.subr.mxu0 0.0
    %530 = vmatpush1.msra.mxu0 0.0
    %531 = vmatprep.subr.mxu0 0.0
    %532 = vmatpush1.msra.mxu0 0.0
    %533 = vmatprep.subr.mxu0 0.0
    %534 = vmatpush1.msra.mxu0 0.0
    %535 = vmatprep.subr.mxu0 0.0
    %536 = vmatpush1.msra.mxu0 0.0
    %537 = vmatprep.subr.mxu0 0.0
    %538 = vmatpush1.msra.mxu0 0.0
    %539 = vmatprep.subr.mxu0 0.0
    %540 = vmatpush1.msra.mxu0 0.0
    %541 = vmatprep.subr.mxu0 0.0
    %542 = vmatpush1.msra.mxu0 0.0
    %543 = vmatprep.subr.mxu0 0.0
    %544 = vmatpush1.msra.mxu0 0.0
    %545 = vmatprep.subr.mxu0 0.0
    %546 = vmatpush1.msra.mxu0 0.0
    %547 = vmatprep.subr.mxu0 0.0
    %548 = vmatpush1.msra.mxu0 0.0
    %549 = vmatprep.subr.mxu0 0.0
    %550 = vmatpush1.msra.mxu0 0.0
    %551 = vmatprep.subr.mxu0 0.0
    %552 = vmatpush1.msra.mxu0 0.0
    %553 = vmatprep.subr.mxu0 0.0
    %554 = vmatpush1.msra.mxu0 0.0
    %555 = vmatprep.subr.mxu0 0.0
    %v556 = vand.u32 %v46, 4294901760
    %557 = vmatpush1.msra.mxu0 %v556
    %558 = vmatprep.subr.mxu0 0.0
    %v559 = vand.u32 %v45, 4294901760
    %560 = vmatpush1.msra.mxu0 %v559
    %561 = vmatprep.subr.mxu0 0.0
    %562 = vmatpush2.msra.mxu0 0.0
    %563 = vmatprep.subr.mxu0 0.0
    %564 = vmatpush2.msra.mxu0 0.0
    %565 = vmatprep.subr.mxu0 0.0
    %566 = vmatpush2.msra.mxu0 0.0
    %567 = vmatprep.subr.mxu0 0.0
    %568 = vmatpush2.msra.mxu0 0.0
    %569 = vmatprep.subr.mxu0 0.0
    %570 = vmatpush2.msra.mxu0 0.0
    %571 = vmatprep.subr.mxu0 0.0
    %572 = vmatpush2.msra.mxu0 0.0
    %573 = vmatprep.subr.mxu0 0.0
    %574 = vmatpush2.msra.mxu0 0.0
    %575 = vmatprep.subr.mxu0 0.0
    %576 = vmatpush2.msra.mxu0 0.0
    %577 = vmatprep.subr.mxu0 0.0
    %578 = vmatpush2.msra.mxu0 0.0
    %579 = vmatprep.subr.mxu0 0.0
    %580 = vmatpush2.msra.mxu0 0.0
    %581 = vmatprep.subr.mxu0 0.0
    %582 = vmatpush2.msra.mxu0 0.0
    %583 = vmatprep.subr.mxu0 0.0
    %584 = vmatpush2.msra.mxu0 0.0
    %585 = vmatprep.subr.mxu0 0.0
    %586 = vmatpush2.msra.mxu0 0.0
    %587 = vmatprep.subr.mxu0 0.0
    %588 = vmatpush2.msra.mxu0 0.0
    %589 = vmatprep.subr.mxu0 0.0
    %590 = vmatpush2.msra.mxu0 0.0
    %591 = vmatprep.subr.mxu0 0.0
    %592 = vmatpush2.msra.mxu0 0.0
    %593 = vmatprep.mubr.f32.mxu0 0.0
    %v594 = vand.u32 %v525, 4294901760
    %v595 = vsub.f32 %v525, %v594
    %v596 = vand.u32 %v595, 4294901760
    %v597 = vsub.f32 %v595, %v596
    %v598 = vand.u32 %v597, 4294901760
    %599 = vmatmul.mubr.f32.gmra.mxu0 %v598
    %v600 = vpop.f32.mrf.mxu0
    %v601 = vadd.f32 0.0, %v600
    %v602 = vpop.f32.mrf.mxu0
    %603 = vdwg.mxu0
    %604 = vmatprep.subr.mxu0 0.0
    %605 = vmatpush1.msra.mxu0 0.0
    %606 = vmatprep.subr.mxu0 0.0
    %607 = vmatpush1.msra.mxu0 0.0
    %608 = vmatprep.subr.mxu0 0.0
    %609 = vmatpush1.msra.mxu0 0.0
    %610 = vmatprep.subr.mxu0 0.0
    %611 = vmatpush1.msra.mxu0 0.0
    %612 = vmatprep.subr.mxu0 0.0
    %613 = vmatpush1.msra.mxu0 0.0
    %614 = vmatprep.subr.mxu0 0.0
    %615 = vmatpush1.msra.mxu0 0.0
    %616 = vmatprep.subr.mxu0 0.0
    %617 = vmatpush1.msra.mxu0 0.0
    %618 = vmatprep.subr.mxu0 0.0
    %619 = vmatpush1.msra.mxu0 0.0
    %620 = vmatprep.subr.mxu0 0.0
    %621 = vmatpush1.msra.mxu0 0.0
    %622 = vmatprep.subr.mxu0 0.0
    %623 = vmatpush1.msra.mxu0 0.0
    %624 = vmatprep.subr.mxu0 0.0
    %625 = vmatpush1.msra.mxu0 0.0
    %626 = vmatprep.subr.mxu0 0.0
    %627 = vmatpush1.msra.mxu0 0.0
    %628 = vmatprep.subr.mxu0 0.0
    %629 = vmatpush1.msra.mxu0 0.0
    %630 = vmatprep.subr.mxu0 0.0
    %631 = vmatpush1.msra.mxu0 0.0
    %632 = vmatprep.subr.mxu0 0.0
    %v633 = vand.u32 %v46, 4294901760
    %v634 = vsub.f32 %v46, %v633
    %v635 = vand.u32 %v634, 4294901760
    %v636 = vsub.f32 %v634, %v635
    %v637 = vand.u32 %v636, 4294901760
    %638 = vmatpush1.msra.mxu0 %v637
    %639 = vmatprep.subr.mxu0 0.0
    %v640 = vand.u32 %v45, 4294901760
    %v641 = vsub.f32 %v45, %v640
    %v642 = vand.u32 %v641, 4294901760
    %v643 = vsub.f32 %v641, %v642
    %v644 = vand.u32 %v643, 4294901760
    %645 = vmatpush1.msra.mxu0 %v644
    %646 = vmatprep.subr.mxu0 0.0
    %647 = vmatpush2.msra.mxu0 0.0
    %648 = vmatprep.subr.mxu0 0.0
    %649 = vmatpush2.msra.mxu0 0.0
    %650 = vmatprep.subr.mxu0 0.0
    %651 = vmatpush2.msra.mxu0 0.0
    %652 = vmatprep.subr.mxu0 0.0
    %653 = vmatpush2.msra.mxu0 0.0
    %654 = vmatprep.subr.mxu0 0.0
    %655 = vmatpush2.msra.mxu0 0.0
    %656 = vmatprep.subr.mxu0 0.0
    %657 = vmatpush2.msra.mxu0 0.0
    %658 = vmatprep.subr.mxu0 0.0
    %659 = vmatpush2.msra.mxu0 0.0
    %660 = vmatprep.subr.mxu0 0.0
    %661 = vmatpush2.msra.mxu0 0.0
    %662 = vmatprep.subr.mxu0 0.0
    %663 = vmatpush2.msra.mxu0 0.0
    %664 = vmatprep.subr.mxu0 0.0
    %665 = vmatpush2.msra.mxu0 0.0
    %666 = vmatprep.subr.mxu0 0.0
    %667 = vmatpush2.msra.mxu0 0.0
    %668 = vmatprep.subr.mxu0 0.0
    %669 = vmatpush2.msra.mxu0 0.0
    %670 = vmatprep.subr.mxu0 0.0
    %671 = vmatpush2.msra.mxu0 0.0
    %672 = vmatprep.subr.mxu0 0.0
    %673 = vmatpush2.msra.mxu0 0.0
    %674 = vmatprep.subr.mxu0 0.0
    %675 = vmatpush2.msra.mxu0 0.0
    %676 = vmatprep.subr.mxu0 0.0
    %677 = vmatpush2.msra.mxu0 0.0
    %678 = vmatprep.mubr.f32.mxu0 0.0
    %v679 = vand.u32 %v525, 4294901760
    %680 = vmatmul.mubr.f32.gmra.mxu0 %v679
    %v681 = vpop.f32.mrf.mxu0
    %v682 = vadd.f32 %v601, %v681
    %v683 = vpop.f32.mrf.mxu0
    %684 = vdwg.mxu0
    %685 = vmatprep.subr.mxu0 0.0
    %686 = vmatpush1.msra.mxu0 0.0
    %687 = vmatprep.subr.mxu0 0.0
    %688 = vmatpush1.msra.mxu0 0.0
    %689 = vmatprep.subr.mxu0 0.0
    %690 = vmatpush1.msra.mxu0 0.0
    %691 = vmatprep.subr.mxu0 0.0
    %692 = vmatpush1.msra.mxu0 0.0
    %693 = vmatprep.subr.mxu0 0.0
    %694 = vmatpush1.msra.mxu0 0.0
    %695 = vmatprep.subr.mxu0 0.0
    %696 = vmatpush1.msra.mxu0 0.0
    %697 = vmatprep.subr.mxu0 0.0
    %698 = vmatpush1.msra.mxu0 0.0
    %699 = vmatprep.subr.mxu0 0.0
    %700 = vmatpush1.msra.mxu0 0.0
    %701 = vmatprep.subr.mxu0 0.0
    %702 = vmatpush1.msra.mxu0 0.0
    %703 = vmatprep.subr.mxu0 0.0
    %704 = vmatpush1.msra.mxu0 0.0
    %705 = vmatprep.subr.mxu0 0.0
    %706 = vmatpush1.msra.mxu0 0.0
    %707 = vmatprep.subr.mxu0 0.0
    %708 = vmatpush1.msra.mxu0 0.0
    %709 = vmatprep.subr.mxu0 0.0
    %710 = vmatpush1.msra.mxu0 0.0
    %711 = vmatprep.subr.mxu0 0.0
    %712 = vmatpush1.msra.mxu0 0.0
    %713 = vmatprep.subr.mxu0 0.0
    %v714 = vand.u32 %v46, 4294901760
    %v715 = vsub.f32 %v46, %v714
    %716 = vmatpush1.msra.mxu0 %v715
    %717 = vmatprep.subr.mxu0 0.0
    %v718 = vand.u32 %v45, 4294901760
    %v719 = vsub.f32 %v45, %v718
    %720 = vmatpush1.msra.mxu0 %v719
    %721 = vmatprep.subr.mxu0 0.0
    %722 = vmatpush2.msra.mxu0 0.0
    %723 = vmatprep.subr.mxu0 0.0
    %724 = vmatpush2.msra.mxu0 0.0
    %725 = vmatprep.subr.mxu0 0.0
    %726 = vmatpush2.msra.mxu0 0.0
    %727 = vmatprep.subr.mxu0 0.0
    %728 = vmatpush2.msra.mxu0 0.0
    %729 = vmatprep.subr.mxu0 0.0
    %730 = vmatpush2.msra.mxu0 0.0
    %731 = vmatprep.subr.mxu0 0.0
    %732 = vmatpush2.msra.mxu0 0.0
    %733 = vmatprep.subr.mxu0 0.0
    %734 = vmatpush2.msra.mxu0 0.0
    %735 = vmatprep.subr.mxu0 0.0
    %736 = vmatpush2.msra.mxu0 0.0
    %737 = vmatprep.subr.mxu0 0.0
    %738 = vmatpush2.msra.mxu0 0.0
    %739 = vmatprep.subr.mxu0 0.0
    %740 = vmatpush2.msra.mxu0 0.0
    %741 = vmatprep.subr.mxu0 0.0
    %742 = vmatpush2.msra.mxu0 0.0
    %743 = vmatprep.subr.mxu0 0.0
    %744 = vmatpush2.msra.mxu0 0.0
    %745 = vmatprep.subr.mxu0 0.0
    %746 = vmatpush2.msra.mxu0 0.0
    %747 = vmatprep.subr.mxu0 0.0
    %748 = vmatpush2.msra.mxu0 0.0
    %749 = vmatprep.subr.mxu0 0.0
    %750 = vmatpush2.msra.mxu0 0.0
    %751 = vmatprep.subr.mxu0 0.0
    %752 = vmatpush2.msra.mxu0 0.0
    %753 = vmatprep.mubr.f32.mxu0 0.0
    %v754 = vand.u32 %v525, 4294901760
    %v755 = vsub.f32 %v525, %v754
    %756 = vmatmul.mubr.f32.gmra.mxu0 %v755
    %v757 = vpop.f32.mrf.mxu0
    %v758 = vadd.f32 %v682, %v757
    %v759 = vpop.f32.mrf.mxu0
    %760 = vdwg.mxu0
    %761 = vmatprep.subr.mxu0 0.0
    %762 = vmatpush1.msra.mxu0 0.0
    %763 = vmatprep.subr.mxu0 0.0
    %764 = vmatpush1.msra.mxu0 0.0
    %765 = vmatprep.subr.mxu0 0.0
    %766 = vmatpush1.msra.mxu0 0.0
    %767 = vmatprep.subr.mxu0 0.0
    %768 = vmatpush1.msra.mxu0 0.0
    %769 = vmatprep.subr.mxu0 0.0
    %770 = vmatpush1.msra.mxu0 0.0
    %771 = vmatprep.subr.mxu0 0.0
    %772 = vmatpush1.msra.mxu0 0.0
    %773 = vmatprep.subr.mxu0 0.0
    %774 = vmatpush1.msra.mxu0 0.0
    %775 = vmatprep.subr.mxu0 0.0
    %776 = vmatpush1.msra.mxu0 0.0
    %777 = vmatprep.subr.mxu0 0.0
    %778 = vmatpush1.msra.mxu0 0.0
    %779 = vmatprep.subr.mxu0 0.0
    %780 = vmatpush1.msra.mxu0 0.0
    %781 = vmatprep.subr.mxu0 0.0
    %782 = vmatpush1.msra.mxu0 0.0
    %783 = vmatprep.subr.mxu0 0.0
    %784 = vmatpush1.msra.mxu0 0.0
    %785 = vmatprep.subr.mxu0 0.0
    %786 = vmatpush1.msra.mxu0 0.0
    %787 = vmatprep.subr.mxu0 0.0
    %788 = vmatpush1.msra.mxu0 0.0
    %789 = vmatprep.subr.mxu0 0.0
    %v790 = vand.u32 %v46, 4294901760
    %791 = vmatpush1.msra.mxu0 %v790
    %792 = vmatprep.subr.mxu0 0.0
    %v793 = vand.u32 %v45, 4294901760
    %794 = vmatpush1.msra.mxu0 %v793
    %795 = vmatprep.subr.mxu0 0.0
    %796 = vmatpush2.msra.mxu0 0.0
    %797 = vmatprep.subr.mxu0 0.0
    %798 = vmatpush2.msra.mxu0 0.0
    %799 = vmatprep.subr.mxu0 0.0
    %800 = vmatpush2.msra.mxu0 0.0
    %801 = vmatprep.subr.mxu0 0.0
    %802 = vmatpush2.msra.mxu0 0.0
    %803 = vmatprep.subr.mxu0 0.0
    %804 = vmatpush2.msra.mxu0 0.0
    %805 = vmatprep.subr.mxu0 0.0
    %806 = vmatpush2.msra.mxu0 0.0
    %807 = vmatprep.subr.mxu0 0.0
    %808 = vmatpush2.msra.mxu0 0.0
    %809 = vmatprep.subr.mxu0 0.0
    %810 = vmatpush2.msra.mxu0 0.0
    %811 = vmatprep.subr.mxu0 0.0
    %812 = vmatpush2.msra.mxu0 0.0
    %813 = vmatprep.subr.mxu0 0.0
    %814 = vmatpush2.msra.mxu0 0.0
    %815 = vmatprep.subr.mxu0 0.0
    %816 = vmatpush2.msra.mxu0 0.0
    %817 = vmatprep.subr.mxu0 0.0
    %818 = vmatpush2.msra.mxu0 0.0
    %819 = vmatprep.subr.mxu0 0.0
    %820 = vmatpush2.msra.mxu0 0.0
    %821 = vmatprep.subr.mxu0 0.0
    %822 = vmatpush2.msra.mxu0 0.0
    %823 = vmatprep.subr.mxu0 0.0
    %824 = vmatpush2.msra.mxu0 0.0
    %825 = vmatprep.subr.mxu0 0.0
    %826 = vmatpush2.msra.mxu0 0.0
    %827 = vmatprep.mubr.f32.mxu0 0.0
    %v828 = vand.u32 %v525, 4294901760
    %v829 = vsub.f32 %v525, %v828
    %v830 = vand.u32 %v829, 4294901760
    %831 = vmatmul.mubr.f32.gmra.mxu0 %v830
    %v832 = vpop.f32.mrf.mxu0
    %v833 = vadd.f32 %v758, %v832
    %v834 = vpop.f32.mrf.mxu0
    %835 = vdwg.mxu0
    %836 = vmatprep.subr.mxu0 0.0
    %837 = vmatpush1.msra.mxu0 0.0
    %838 = vmatprep.subr.mxu0 0.0
    %839 = vmatpush1.msra.mxu0 0.0
    %840 = vmatprep.subr.mxu0 0.0
    %841 = vmatpush1.msra.mxu0 0.0
    %842 = vmatprep.subr.mxu0 0.0
    %843 = vmatpush1.msra.mxu0 0.0
    %844 = vmatprep.subr.mxu0 0.0
    %845 = vmatpush1.msra.mxu0 0.0
    %846 = vmatprep.subr.mxu0 0.0
    %847 = vmatpush1.msra.mxu0 0.0
    %848 = vmatprep.subr.mxu0 0.0
    %849 = vmatpush1.msra.mxu0 0.0
    %850 = vmatprep.subr.mxu0 0.0
    %851 = vmatpush1.msra.mxu0 0.0
    %852 = vmatprep.subr.mxu0 0.0
    %853 = vmatpush1.msra.mxu0 0.0
    %854 = vmatprep.subr.mxu0 0.0
    %855 = vmatpush1.msra.mxu0 0.0
    %856 = vmatprep.subr.mxu0 0.0
    %857 = vmatpush1.msra.mxu0 0.0
    %858 = vmatprep.subr.mxu0 0.0
    %859 = vmatpush1.msra.mxu0 0.0
    %860 = vmatprep.subr.mxu0 0.0
    %861 = vmatpush1.msra.mxu0 0.0
    %862 = vmatprep.subr.mxu0 0.0
    %863 = vmatpush1.msra.mxu0 0.0
    %864 = vmatprep.subr.mxu0 0.0
    %v865 = vand.u32 %v46, 4294901760
    %v866 = vsub.f32 %v46, %v865
    %v867 = vand.u32 %v866, 4294901760
    %868 = vmatpush1.msra.mxu0 %v867
    %869 = vmatprep.subr.mxu0 0.0
    %v870 = vand.u32 %v45, 4294901760
    %v871 = vsub.f32 %v45, %v870
    %v872 = vand.u32 %v871, 4294901760
    %873 = vmatpush1.msra.mxu0 %v872
    %874 = vmatprep.subr.mxu0 0.0
    %875 = vmatpush2.msra.mxu0 0.0
    %876 = vmatprep.subr.mxu0 0.0
    %877 = vmatpush2.msra.mxu0 0.0
    %878 = vmatprep.subr.mxu0 0.0
    %879 = vmatpush2.msra.mxu0 0.0
    %880 = vmatprep.subr.mxu0 0.0
    %881 = vmatpush2.msra.mxu0 0.0
    %882 = vmatprep.subr.mxu0 0.0
    %883 = vmatpush2.msra.mxu0 0.0
    %884 = vmatprep.subr.mxu0 0.0
    %885 = vmatpush2.msra.mxu0 0.0
    %886 = vmatprep.subr.mxu0 0.0
    %887 = vmatpush2.msra.mxu0 0.0
    %888 = vmatprep.subr.mxu0 0.0
    %889 = vmatpush2.msra.mxu0 0.0
    %890 = vmatprep.subr.mxu0 0.0
    %891 = vmatpush2.msra.mxu0 0.0
    %892 = vmatprep.subr.mxu0 0.0
    %893 = vmatpush2.msra.mxu0 0.0
    %894 = vmatprep.subr.mxu0 0.0
    %895 = vmatpush2.msra.mxu0 0.0
    %896 = vmatprep.subr.mxu0 0.0
    %897 = vmatpush2.msra.mxu0 0.0
    %898 = vmatprep.subr.mxu0 0.0
    %899 = vmatpush2.msra.mxu0 0.0
    %900 = vmatprep.subr.mxu0 0.0
    %901 = vmatpush2.msra.mxu0 0.0
    %902 = vmatprep.subr.mxu0 0.0
    %903 = vmatpush2.msra.mxu0 0.0
    %904 = vmatprep.subr.mxu0 0.0
    %905 = vmatpush2.msra.mxu0 0.0
    %906 = vmatprep.mubr.f32.mxu0 0.0
    %v907 = vand.u32 %v525, 4294901760
    %908 = vmatmul.mubr.f32.gmra.mxu0 %v907
    %v909 = vpop.f32.mrf.mxu0
    %v910 = vadd.f32 %v833, %v909
    %v911 = vpop.f32.mrf.mxu0
    %912 = vdwg.mxu0
    %913 = vmatprep.subr.mxu0 0.0
    %914 = vmatpush1.msra.mxu0 0.0
    %915 = vmatprep.subr.mxu0 0.0
    %916 = vmatpush1.msra.mxu0 0.0
    %917 = vmatprep.subr.mxu0 0.0
    %918 = vmatpush1.msra.mxu0 0.0
    %919 = vmatprep.subr.mxu0 0.0
    %920 = vmatpush1.msra.mxu0 0.0
    %921 = vmatprep.subr.mxu0 0.0
    %922 = vmatpush1.msra.mxu0 0.0
    %923 = vmatprep.subr.mxu0 0.0
    %924 = vmatpush1.msra.mxu0 0.0
    %925 = vmatprep.subr.mxu0 0.0
    %926 = vmatpush1.msra.mxu0 0.0
    %927 = vmatprep.subr.mxu0 0.0
    %928 = vmatpush1.msra.mxu0 0.0
    %929 = vmatprep.subr.mxu0 0.0
    %930 = vmatpush1.msra.mxu0 0.0
    %931 = vmatprep.subr.mxu0 0.0
    %932 = vmatpush1.msra.mxu0 0.0
    %933 = vmatprep.subr.mxu0 0.0
    %934 = vmatpush1.msra.mxu0 0.0
    %935 = vmatprep.subr.mxu0 0.0
    %936 = vmatpush1.msra.mxu0 0.0
    %937 = vmatprep.subr.mxu0 0.0
    %938 = vmatpush1.msra.mxu0 0.0
    %939 = vmatprep.subr.mxu0 0.0
    %940 = vmatpush1.msra.mxu0 0.0
    %941 = vmatprep.subr.mxu0 0.0
    %v942 = vand.u32 %v46, 4294901760
    %943 = vmatpush1.msra.mxu0 %v942
    %944 = vmatprep.subr.mxu0 0.0
    %v945 = vand.u32 %v45, 4294901760
    %946 = vmatpush1.msra.mxu0 %v945
    %947 = vmatprep.subr.mxu0 0.0
    %948 = vmatpush2.msra.mxu0 0.0
    %949 = vmatprep.subr.mxu0 0.0
    %950 = vmatpush2.msra.mxu0 0.0
    %951 = vmatprep.subr.mxu0 0.0
    %952 = vmatpush2.msra.mxu0 0.0
    %953 = vmatprep.subr.mxu0 0.0
    %954 = vmatpush2.msra.mxu0 0.0
    %955 = vmatprep.subr.mxu0 0.0
    %956 = vmatpush2.msra.mxu0 0.0
    %957 = vmatprep.subr.mxu0 0.0
    %958 = vmatpush2.msra.mxu0 0.0
    %959 = vmatprep.subr.mxu0 0.0
    %960 = vmatpush2.msra.mxu0 0.0
    %961 = vmatprep.subr.mxu0 0.0
    %962 = vmatpush2.msra.mxu0 0.0
    %963 = vmatprep.subr.mxu0 0.0
    %964 = vmatpush2.msra.mxu0 0.0
    %965 = vmatprep.subr.mxu0 0.0
    %966 = vmatpush2.msra.mxu0 0.0
    %967 = vmatprep.subr.mxu0 0.0
    %968 = vmatpush2.msra.mxu0 0.0
    %969 = vmatprep.subr.mxu0 0.0
    %970 = vmatpush2.msra.mxu0 0.0
    %971 = vmatprep.subr.mxu0 0.0
    %972 = vmatpush2.msra.mxu0 0.0
    %973 = vmatprep.subr.mxu0 0.0
    %974 = vmatpush2.msra.mxu0 0.0
    %975 = vmatprep.subr.mxu0 0.0
    %976 = vmatpush2.msra.mxu0 0.0
    %977 = vmatprep.subr.mxu0 0.0
    %978 = vmatpush2.msra.mxu0 0.0
    %979 = vmatprep.mubr.f32.mxu0 0.0
    %v980 = vand.u32 %v525, 4294901760
    %981 = vmatmul.mubr.f32.gmra.mxu0 %v980
    %v982 = vpop.f32.mrf.mxu0
    %v983 = vadd.f32 %v910, %v982
    %v984 = vpop.f32.mrf.mxu0
    %985 = vdwg.mxu0
    %v986 = vsub.f32 %v983, %v521
    %v987 = vmul.f32 %v986, %v986
    %vm988 = vcmask 261120
    %v989 = vsel %vm988, %v987, 0.0
    %990 = vadd.xlane.f32.xlu0 %v989
    %v991 = vpop.xlane.xlu0 %990
    %v992 = vrsqrt.pop %v991
    %v993 = vmul.f32 %v991, %v992
    %vm994 = vcmp.eq.f32.partialorder %v991, inf
    %v995 = vsel %vm994, %v991, %v993
    %vm996 = vcmp.eq.f32.partialorder %v991, 0.0
    %v997 = vand.u32 %v991, 2147483648
    %v998 = vsel %vm996, %v997, %v995
    %s999 = smul.u32 0, 8
    %v1000 = vlaneseq
    %v1001 = vshrl.u32 %v1000, 7
    %v1002 = vstv %s999
    %v1003 = vadd.s32 %v1002, %v1001
    %vm1004 = vcmp.lt.s32.totalorder %v1003, 8
    %v1005 = vsel %vm1004, %v998, 0.0
    %vm1006 = vcmask 7168
    %1007 = vst.msk [vmem:[%s3] sm:$0xff] %vm1006, %v1005
    // Predicated region
    $region22: #{tpu_custom_call.1} parent=1 // pred_check
      _
    $region23: #{tpu_custom_call.1} parent=1 // pred_check_branch
      %1009 = sbr.rel (0) target = $region25
    $region24: #{tpu_custom_call.1} parent=1 // pred_region
      _
    $region25: #{tpu_custom_call.1} parent=1 // pred_fallthru
      _
    // Predicated region
    $region26: #{tpu_custom_call.1} parent=1 // pred_check
      _
    $region27: #{tpu_custom_call.1} parent=1 // pred_check_branch
      %1011 = sbr.rel (0) target = $region29
    $region28: #{tpu_custom_call.1} parent=1 // pred_region
      _
    $region29: #{tpu_custom_call.1} parent=1 // pred_fallthru
      _
    %1012 = vsyncpa [#allocation3], 1
    %1013 = vsyncpa [#allocation5], 1

</llo_original>
